<compile_context>
chip_gen: v7x
topology: tpu7x:2x2x1
jax: 0.10.0
libtpu: 0.0.40
codegen_flags: <defaults>
</compile_context>

<pallas_src>
import functools

import jax
import jax.numpy as jnp
from jax.experimental import pallas as pl
from jax.experimental.pallas import tpu as pltpu


class VFETemplate:
    """Mirror of the PyTorch template: holds config, exposes forward()."""

    def __init__(self, model_cfg=None, num_frames=1, **kwargs):
        self.model_cfg = model_cfg
        self.num_frames = num_frames
        # __init__ of the reference module defines no parameters/weights.

    def get_output_feature_dim(self, point_dim):
        return point_dim

    def forward(self, voxel_features, voxel_num_points):
        return mean_vfe(voxel_features, voxel_num_points)


def _round_up(x, m):
    return ((x + m - 1) // m) * m


def _mean_vfe_kernel(vf_ref, npts_ref, out_ref, *, P, C):
    """vf_ref: (TN, P*C) f32; npts_ref: (TN, 1) f32; out_ref: (TN, C) f32."""
    vf = vf_ref[...]                                   # (TN, P*C)
    npts = npts_ref[...]                               # (TN, 1)

    # Masked sum over the P point slots via static lane slices: slot p of
    # voxel i contributes iff p < num_points[i].  jnp.where (not a 0/1
    # multiply) so garbage/NaN pad points never poison the sum.
    acc = jnp.zeros((vf.shape[0], C), dtype=jnp.float32)
    for p in range(P):
        chunk = vf[:, p * C:(p + 1) * C]               # (TN, C)
        acc = acc + jnp.where(npts > float(p), chunk, 0.0)

    denom = jnp.maximum(npts, 1.0)                     # clamp like MeanVFE
    out_ref[...] = acc * pl.reciprocal(denom, approx=False)


def mean_vfe(voxel_features, voxel_num_points, *, tile_n=1024):
    """voxel_features: (N, P, C); voxel_num_points: (N,) int/float.

    Returns vfe_features: (N, C) f32.
    """
    N, P, C = voxel_features.shape

    # Flatten each voxel's (P, C) slab into one contiguous lane-dense row.
    vf = voxel_features.astype(jnp.float32).reshape(N, P * C)
    npts = voxel_num_points.astype(jnp.float32).reshape(N, 1)

    # Pick a tile size: large (amortizes grid-step overhead) but never larger
    # than the (sublane-rounded) voxel count; pad N to a tile multiple.
    tile_n = max(8, min(tile_n, _round_up(N, 8)))
    n_pad = _round_up(N, tile_n)
    if n_pad != N:
        vf = jnp.pad(vf, ((0, n_pad - N), (0, 0)))
        npts = jnp.pad(npts, ((0, n_pad - N), (0, 0)))  # count 0 -> output 0

    kernel = functools.partial(_mean_vfe_kernel, P=P, C=C)

    out = pl.pallas_call(
        kernel,
        out_shape=jax.ShapeDtypeStruct((n_pad, C), jnp.float32),
        grid_spec=pltpu.PrefetchScalarGridSpec(
            num_scalar_prefetch=0,
            grid=(n_pad // tile_n,),
            in_specs=[
                pl.BlockSpec((tile_n, P * C), lambda i: (i, 0)),
                pl.BlockSpec((tile_n, 1), lambda i: (i, 0)),
            ],
            out_specs=pl.BlockSpec((tile_n, C), lambda i: (i, 0)),
        ),
        compiler_params=pltpu.CompilerParams(
            dimension_semantics=("parallel",),
            vmem_limit_bytes=32 * 1024 * 1024,
        ),
    )(vf, npts)

    return out[:N]


if __name__ == "__main__":
    key = jax.random.PRNGKey(0)
    k1, k2 = jax.random.split(key)

    # Small shapes consistent with a VFE; N deliberately NOT a multiple of the
    # tile to exercise the wrapper-side padding path.
    num_voxels, max_points, point_dim = 50, 8, 4
    voxel_features = jax.random.normal(
        k1, (num_voxels, max_points, point_dim), dtype=jnp.float32
    )
    voxel_num_points = jax.random.randint(
        k2, (num_voxels,), minval=0, maxval=max_points + 1, dtype=jnp.int32
    )

    vfe = VFETemplate(model_cfg=None, num_frames=1)
    out = vfe.forward(voxel_features, voxel_num_points)
    out = jax.block_until_ready(out)

    # Pure-JAX reference check of the masked-mean semantics.
    mask = (
        jnp.arange(max_points)[None, :, None]
        < voxel_num_points.astype(jnp.float32)[:, None, None]
    )
    ref = jnp.sum(jnp.where(mask, voxel_features, 0.0), axis=1) / jnp.maximum(
        voxel_num_points.astype(jnp.float32)[:, None], 1.0
    )
    assert out.shape == (num_voxels, point_dim)
    assert jnp.allclose(out, ref, atol=1e-5, rtol=1e-5)

    print("KERNEL_OK")
</pallas_src>

<mosaic_0001>
module attributes {stable_mosaic.version = 11 : i64} {
  func.func @_mean_vfe_kernel(%arg0: i32, %arg1: memref<56x32xf32, #tpu.memory_space<vmem>>, %arg2: memref<56x1xf32, #tpu.memory_space<vmem>>, %arg3: memref<56x4xf32, #tpu.memory_space<vmem>>) attributes {dimension_semantics = [#tpu.dimension_semantics<parallel>], iteration_bounds = array<i64: 1>, scalar_prefetch = 0 : i64, scratch_operands = 0 : i64, tpu.core_type = #tpu.core_type<tc>, window_params = [{transform_indices = @transform_0, window_bounds = array<i64: 56, 32>}, {transform_indices = @transform_1, window_bounds = array<i64: 56, 1>}, {transform_indices = @transform_2, window_bounds = array<i64: 56, 4>}]} {
    %c0 = arith.constant 0 : index
    %c0_0 = arith.constant 0 : index
    %0 = vector.load %arg1[%c0, %c0_0] : memref<56x32xf32, #tpu.memory_space<vmem>>, vector<56x32xf32>
    %c0_1 = arith.constant 0 : index
    %c0_2 = arith.constant 0 : index
    %1 = vector.load %arg2[%c0_1, %c0_2] : memref<56x1xf32, #tpu.memory_space<vmem>>, vector<56x1xf32>
    %cst = arith.constant 0.000000e+00 : f32
    %2 = vector.broadcast %cst : f32 to vector<56x4xf32>
    %3 = vector.extract_strided_slice %0 {offsets = [0, 0], sizes = [56, 4], strides = [1, 1]} : vector<56x32xf32> to vector<56x4xf32>
    %cst_3 = arith.constant 0.000000e+00 : f32
    %4 = vector.broadcast %cst_3 : f32 to vector<56x1xf32>
    %5 = arith.cmpf ogt, %1, %4 : vector<56x1xf32>
    %cst_4 = arith.constant 0.000000e+00 : f32
    %6 = vector.shape_cast %5 : vector<56x1xi1> to vector<56x1xi1>
    %7 = vector.broadcast %6 : vector<56x1xi1> to vector<56x4xi1>
    %8 = vector.broadcast %cst_4 : f32 to vector<56x4xf32>
    %9 = arith.select %7, %3, %8 : vector<56x4xi1>, vector<56x4xf32>
    %10 = arith.addf %2, %9 : vector<56x4xf32>
    %11 = vector.extract_strided_slice %0 {offsets = [0, 4], sizes = [56, 4], strides = [1, 1]} : vector<56x32xf32> to vector<56x4xf32>
    %cst_5 = arith.constant 1.000000e+00 : f32
    %12 = vector.broadcast %cst_5 : f32 to vector<56x1xf32>
    %13 = arith.cmpf ogt, %1, %12 : vector<56x1xf32>
    %cst_6 = arith.constant 0.000000e+00 : f32
    %14 = vector.shape_cast %13 : vector<56x1xi1> to vector<56x1xi1>
    %15 = vector.broadcast %14 : vector<56x1xi1> to vector<56x4xi1>
    %16 = vector.broadcast %cst_6 : f32 to vector<56x4xf32>
    %17 = arith.select %15, %11, %16 : vector<56x4xi1>, vector<56x4xf32>
    %18 = arith.addf %10, %17 : vector<56x4xf32>
    %19 = vector.extract_strided_slice %0 {offsets = [0, 8], sizes = [56, 4], strides = [1, 1]} : vector<56x32xf32> to vector<56x4xf32>
    %cst_7 = arith.constant 2.000000e+00 : f32
    %20 = vector.broadcast %cst_7 : f32 to vector<56x1xf32>
    %21 = arith.cmpf ogt, %1, %20 : vector<56x1xf32>
    %cst_8 = arith.constant 0.000000e+00 : f32
    %22 = vector.shape_cast %21 : vector<56x1xi1> to vector<56x1xi1>
    %23 = vector.broadcast %22 : vector<56x1xi1> to vector<56x4xi1>
    %24 = vector.broadcast %cst_8 : f32 to vector<56x4xf32>
    %25 = arith.select %23, %19, %24 : vector<56x4xi1>, vector<56x4xf32>
    %26 = arith.addf %18, %25 : vector<56x4xf32>
    %27 = vector.extract_strided_slice %0 {offsets = [0, 12], sizes = [56, 4], strides = [1, 1]} : vector<56x32xf32> to vector<56x4xf32>
    %cst_9 = arith.constant 3.000000e+00 : f32
    %28 = vector.broadcast %cst_9 : f32 to vector<56x1xf32>
    %29 = arith.cmpf ogt, %1, %28 : vector<56x1xf32>
    %cst_10 = arith.constant 0.000000e+00 : f32
    %30 = vector.shape_cast %29 : vector<56x1xi1> to vector<56x1xi1>
    %31 = vector.broadcast %30 : vector<56x1xi1> to vector<56x4xi1>
    %32 = vector.broadcast %cst_10 : f32 to vector<56x4xf32>
    %33 = arith.select %31, %27, %32 : vector<56x4xi1>, vector<56x4xf32>
    %34 = arith.addf %26, %33 : vector<56x4xf32>
    %35 = vector.extract_strided_slice %0 {offsets = [0, 16], sizes = [56, 4], strides = [1, 1]} : vector<56x32xf32> to vector<56x4xf32>
    %cst_11 = arith.constant 4.000000e+00 : f32
    %36 = vector.broadcast %cst_11 : f32 to vector<56x1xf32>
    %37 = arith.cmpf ogt, %1, %36 : vector<56x1xf32>
    %cst_12 = arith.constant 0.000000e+00 : f32
    %38 = vector.shape_cast %37 : vector<56x1xi1> to vector<56x1xi1>
    %39 = vector.broadcast %38 : vector<56x1xi1> to vector<56x4xi1>
    %40 = vector.broadcast %cst_12 : f32 to vector<56x4xf32>
    %41 = arith.select %39, %35, %40 : vector<56x4xi1>, vector<56x4xf32>
    %42 = arith.addf %34, %41 : vector<56x4xf32>
    %43 = vector.extract_strided_slice %0 {offsets = [0, 20], sizes = [56, 4], strides = [1, 1]} : vector<56x32xf32> to vector<56x4xf32>
    %cst_13 = arith.constant 5.000000e+00 : f32
    %44 = vector.broadcast %cst_13 : f32 to vector<56x1xf32>
    %45 = arith.cmpf ogt, %1, %44 : vector<56x1xf32>
    %cst_14 = arith.constant 0.000000e+00 : f32
    %46 = vector.shape_cast %45 : vector<56x1xi1> to vector<56x1xi1>
    %47 = vector.broadcast %46 : vector<56x1xi1> to vector<56x4xi1>
    %48 = vector.broadcast %cst_14 : f32 to vector<56x4xf32>
    %49 = arith.select %47, %43, %48 : vector<56x4xi1>, vector<56x4xf32>
    %50 = arith.addf %42, %49 : vector<56x4xf32>
    %51 = vector.extract_strided_slice %0 {offsets = [0, 24], sizes = [56, 4], strides = [1, 1]} : vector<56x32xf32> to vector<56x4xf32>
    %cst_15 = arith.constant 6.000000e+00 : f32
    %52 = vector.broadcast %cst_15 : f32 to vector<56x1xf32>
    %53 = arith.cmpf ogt, %1, %52 : vector<56x1xf32>
    %cst_16 = arith.constant 0.000000e+00 : f32
    %54 = vector.shape_cast %53 : vector<56x1xi1> to vector<56x1xi1>
    %55 = vector.broadcast %54 : vector<56x1xi1> to vector<56x4xi1>
    %56 = vector.broadcast %cst_16 : f32 to vector<56x4xf32>
    %57 = arith.select %55, %51, %56 : vector<56x4xi1>, vector<56x4xf32>
    %58 = arith.addf %50, %57 : vector<56x4xf32>
    %59 = vector.extract_strided_slice %0 {offsets = [0, 28], sizes = [56, 4], strides = [1, 1]} : vector<56x32xf32> to vector<56x4xf32>
    %cst_17 = arith.constant 7.000000e+00 : f32
    %60 = vector.broadcast %cst_17 : f32 to vector<56x1xf32>
    %61 = arith.cmpf ogt, %1, %60 : vector<56x1xf32>
    %cst_18 = arith.constant 0.000000e+00 : f32
    %62 = vector.shape_cast %61 : vector<56x1xi1> to vector<56x1xi1>
    %63 = vector.broadcast %62 : vector<56x1xi1> to vector<56x4xi1>
    %64 = vector.broadcast %cst_18 : f32 to vector<56x4xf32>
    %65 = arith.select %63, %59, %64 : vector<56x4xi1>, vector<56x4xf32>
    %66 = arith.addf %58, %65 : vector<56x4xf32>
    %cst_19 = arith.constant 1.000000e+00 : f32
    %67 = vector.broadcast %cst_19 : f32 to vector<56x1xf32>
    %68 = arith.maximumf %1, %67 : vector<56x1xf32>
    %69 = tpu.reciprocal %68 : vector<56x1xf32> -> vector<56x1xf32>
    %70 = vector.broadcast %69 : vector<56x1xf32> to vector<56x4xf32>
    %71 = arith.mulf %66, %70 : vector<56x4xf32>
    %c0_20 = arith.constant 0 : index
    %c0_21 = arith.constant 0 : index
    %72 = vector.load %arg3[%c0_20, %c0_21] : memref<56x4xf32, #tpu.memory_space<vmem>>, vector<56x4xf32>
    tpu.vector_store %arg3[%c0_20, %c0_21], %71 {strides = array<i32>} : memref<56x4xf32, #tpu.memory_space<vmem>>, vector<56x4xf32>,
    return
  }
  func.func @transform_0(%arg0: i32) -> (i32, i32) {
    %c0_i32 = arith.constant 0 : i32
    %c0_i32_0 = arith.constant 0 : i32
    return %arg0, %c0_i32 : i32, i32
  }
  func.func @transform_1(%arg0: i32) -> (i32, i32) {
    %c0_i32 = arith.constant 0 : i32
    %c0_i32_0 = arith.constant 0 : i32
    return %arg0, %c0_i32 : i32, i32
  }
  func.func @transform_2(%arg0: i32) -> (i32, i32) {
    %c0_i32 = arith.constant 0 : i32
    %c0_i32_0 = arith.constant 0 : i32
    return %arg0, %c0_i32 : i32, i32
  }
}

</mosaic_0001>

<llo_original>
// kernel: tpu_custom_call.1
$region0: #{tpu_custom_call.1}
  #allocation0 [shape = 'u32[]', space=smem, size = 0x4, offset = 0x4, fixed_abs, tag = 'smem constant byte address 0x4 - core index']
  #allocation1 [shape = 'u32[144,128]{1,0:T(1,128)}', space=vmem, size = 0x12000, scoped, tag = 'internal scratch']
  %s0 = inlined_call_operand.vmem [shape: f32[56,32], index: 0, kind: input, shape index: {}]
  %s1 = inlined_call_operand.vmem [shape: f32[56,1], index: 1, kind: input, shape index: {}]
  %s2 = inlined_call_operand.vmem [shape: f32[56,4], index: 2, kind: output, shape index: {}]
  %s3 = sld [smem:[#allocation0]]
  $region18: #{tpu_custom_call.1} parent=0
    _
  %s5 = ssub.s32 1, %s3
  %s6 = scalar_select 0, %s5, %s3
  // Predicated region
  $region2: #{tpu_custom_call.1} parent=0 // pred_check
    _
  $region3: #{tpu_custom_call.1} parent=0 // pred_check_branch
    %8 = sbr.rel (0) target = $region5
  $region4: #{tpu_custom_call.1} parent=0 // pred_region
    _
  $region5: #{tpu_custom_call.1} parent=0 // pred_fallthru
    _
  // Predicated region
  $region6: #{tpu_custom_call.1} parent=0 // pred_check
    _
  $region7: #{tpu_custom_call.1} parent=0 // pred_check_branch
    %10 = sbr.rel (0) target = $region9
  $region8: #{tpu_custom_call.1} parent=0 // pred_region
    _
  $region9: #{tpu_custom_call.1} parent=0 // pred_fallthru
    _
  %v11 = vld [vmem:[%s0] sm:$0xff]
  %v12 = vld [vmem:[%s0 + $0x8] sm:$0xff]
  %v13 = vld [vmem:[%s0 + $0x10] sm:$0xff]
  %v14 = vld [vmem:[%s0 + $0x18] sm:$0xff]
  %v15 = vld [vmem:[%s0 + $0x20] sm:$0xff]
  %v16 = vld [vmem:[%s0 + $0x28] sm:$0xff]
  %v17 = vld [vmem:[%s0 + $0x30] sm:$0xff]
  %v18 = vld [vmem:[%s1] sm:$0xff]
  %v19 = vld [vmem:[%s1 + $0x8] sm:$0xff]
  %v20 = vld [vmem:[%s1 + $0x10] sm:$0xff]
  %v21 = vld [vmem:[%s1 + $0x18] sm:$0xff]
  %v22 = vld [vmem:[%s1 + $0x20] sm:$0xff]
  %v23 = vld [vmem:[%s1 + $0x28] sm:$0xff]
  %v24 = vld [vmem:[%s1 + $0x30] sm:$0xff]
  %vm25 = vcmp.gt.f32.partialorder %v18, 0.0
  %vm26 = vcmp.gt.f32.partialorder %v19, 0.0
  %vm27 = vcmp.gt.f32.partialorder %v20, 0.0
  %vm28 = vcmp.gt.f32.partialorder %v21, 0.0
  %vm29 = vcmp.gt.f32.partialorder %v22, 0.0
  %vm30 = vcmp.gt.f32.partialorder %v23, 0.0
  %vm31 = vcmp.gt.f32.partialorder %v24, 0.0
  %v32 = vsel %vm25, 1, 0
  %v33 = vsel %vm26, 1, 0
  %v34 = vsel %vm27, 1, 0
  %v35 = vsel %vm28, 1, 0
  %v36 = vsel %vm29, 1, 0
  %v37 = vsel %vm30, 1, 0
  %v38 = vsel %vm31, 1, 0
  %39 = vset.pattern.permute.xlu0 0
  %40 = vperm.xlu0 %39, %v32
  %v41 = vpop.permute.xlu0 %40
  %42 = vset.pattern.permute.xlu0 0
  %43 = vperm.xlu0 %42, %v33
  %v44 = vpop.permute.xlu0 %43
  %45 = vset.pattern.permute.xlu0 0
  %46 = vperm.xlu0 %45, %v34
  %v47 = vpop.permute.xlu0 %46
  %48 = vset.pattern.permute.xlu0 0
  %49 = vperm.xlu0 %48, %v35
  %v50 = vpop.permute.xlu0 %49
  %51 = vset.pattern.permute.xlu0 0
  %52 = vperm.xlu0 %51, %v36
  %v53 = vpop.permute.xlu0 %52
  %54 = vset.pattern.permute.xlu0 0
  %55 = vperm.xlu0 %54, %v37
  %v56 = vpop.permute.xlu0 %55
  %57 = vset.pattern.permute.xlu0 0
  %58 = vperm.xlu0 %57, %v38
  %v59 = vpop.permute.xlu0 %58
  %vm60 = vcmp.eq.s32.totalorder %v41, 1
  %vm61 = vcmp.eq.s32.totalorder %v44, 1
  %vm62 = vcmp.eq.s32.totalorder %v47, 1
  %vm63 = vcmp.eq.s32.totalorder %v50, 1
  %vm64 = vcmp.eq.s32.totalorder %v53, 1
  %vm65 = vcmp.eq.s32.totalorder %v56, 1
  %vm66 = vcmp.eq.s32.totalorder %v59, 1
  %v67 = vsel %vm60, %v11, 0.0
  %v68 = vsel %vm61, %v12, 0.0
  %v69 = vsel %vm62, %v13, 0.0
  %v70 = vsel %vm63, %v14, 0.0
  %v71 = vsel %vm64, %v15, 0.0
  %v72 = vsel %vm65, %v16, 0.0
  %v73 = vsel %vm66, %v17, 0.0
  %v74 = vadd.f32 %v67, 0.0
  %v75 = vadd.f32 %v68, 0.0
  %v76 = vadd.f32 %v69, 0.0
  %v77 = vadd.f32 %v70, 0.0
  %v78 = vadd.f32 %v71, 0.0
  %v79 = vadd.f32 %v72, 0.0
  %v80 = vadd.f32 %v73, 0.0
  %vm81 = vcmp.gt.f32.partialorder %v18, 1.0
  %vm82 = vcmp.gt.f32.partialorder %v19, 1.0
  %vm83 = vcmp.gt.f32.partialorder %v20, 1.0
  %vm84 = vcmp.gt.f32.partialorder %v21, 1.0
  %vm85 = vcmp.gt.f32.partialorder %v22, 1.0
  %vm86 = vcmp.gt.f32.partialorder %v23, 1.0
  %vm87 = vcmp.gt.f32.partialorder %v24, 1.0
  %v88 = vsel %vm81, 1, 0
  %v89 = vsel %vm82, 1, 0
  %v90 = vsel %vm83, 1, 0
  %v91 = vsel %vm84, 1, 0
  %v92 = vsel %vm85, 1, 0
  %v93 = vsel %vm86, 1, 0
  %v94 = vsel %vm87, 1, 0
  %95 = vset.pattern.permute.xlu0 0
  %96 = vperm.xlu0 %95, %v88
  %v97 = vpop.permute.xlu0 %96
  %98 = vset.pattern.permute.xlu0 0
  %99 = vperm.xlu0 %98, %v89
  %v100 = vpop.permute.xlu0 %99
  %101 = vset.pattern.permute.xlu0 0
  %102 = vperm.xlu0 %101, %v90
  %v103 = vpop.permute.xlu0 %102
  %104 = vset.pattern.permute.xlu0 0
  %105 = vperm.xlu0 %104, %v91
  %v106 = vpop.permute.xlu0 %105
  %107 = vset.pattern.permute.xlu0 0
  %108 = vperm.xlu0 %107, %v92
  %v109 = vpop.permute.xlu0 %108
  %110 = vset.pattern.permute.xlu0 0
  %111 = vperm.xlu0 %110, %v93
  %v112 = vpop.permute.xlu0 %111
  %113 = vset.pattern.permute.xlu0 0
  %114 = vperm.xlu0 %113, %v94
  %v115 = vpop.permute.xlu0 %114
  %vm116 = vcmp.eq.s32.totalorder %v97, 1
  %vm117 = vcmp.eq.s32.totalorder %v100, 1
  %vm118 = vcmp.eq.s32.totalorder %v103, 1
  %vm119 = vcmp.eq.s32.totalorder %v106, 1
  %vm120 = vcmp.eq.s32.totalorder %v109, 1
  %vm121 = vcmp.eq.s32.totalorder %v112, 1
  %vm122 = vcmp.eq.s32.totalorder %v115, 1
  %v123 = vsel %vm116, %v11, 0.0
  %v124 = vsel %vm117, %v12, 0.0
  %v125 = vsel %vm118, %v13, 0.0
  %v126 = vsel %vm119, %v14, 0.0
  %v127 = vsel %vm120, %v15, 0.0
  %v128 = vsel %vm121, %v16, 0.0
  %v129 = vsel %vm122, %v17, 0.0
  %137 = vrot.lane.b32.xlu0 %v123, 124
  %v138 = vpop.permute.xlu0 %137
  %139 = vrot.lane.b32.xlu0 %v124, 124
  %v140 = vpop.permute.xlu0 %139
  %141 = vrot.lane.b32.xlu0 %v125, 124
  %v142 = vpop.permute.xlu0 %141
  %143 = vrot.lane.b32.xlu0 %v126, 124
  %v144 = vpop.permute.xlu0 %143
  %145 = vrot.lane.b32.xlu0 %v127, 124
  %v146 = vpop.permute.xlu0 %145
  %147 = vrot.lane.b32.xlu0 %v128, 124
  %v148 = vpop.permute.xlu0 %147
  %149 = vrot.lane.b32.xlu0 %v129, 124
  %v150 = vpop.permute.xlu0 %149
  %v158 = vadd.f32 %v74, %v138
  %v159 = vadd.f32 %v75, %v140
  %v160 = vadd.f32 %v76, %v142
  %v161 = vadd.f32 %v77, %v144
  %v162 = vadd.f32 %v78, %v146
  %v163 = vadd.f32 %v79, %v148
  %v164 = vadd.f32 %v80, %v150
  %vm165 = vcmp.gt.f32.partialorder %v18, 2.0
  %vm166 = vcmp.gt.f32.partialorder %v19, 2.0
  %vm167 = vcmp.gt.f32.partialorder %v20, 2.0
  %vm168 = vcmp.gt.f32.partialorder %v21, 2.0
  %vm169 = vcmp.gt.f32.partialorder %v22, 2.0
  %vm170 = vcmp.gt.f32.partialorder %v23, 2.0
  %vm171 = vcmp.gt.f32.partialorder %v24, 2.0
  %v172 = vsel %vm165, 1, 0
  %v173 = vsel %vm166, 1, 0
  %v174 = vsel %vm167, 1, 0
  %v175 = vsel %vm168, 1, 0
  %v176 = vsel %vm169, 1, 0
  %v177 = vsel %vm170, 1, 0
  %v178 = vsel %vm171, 1, 0
  %179 = vset.pattern.permute.xlu0 0
  %180 = vperm.xlu0 %179, %v172
  %v181 = vpop.permute.xlu0 %180
  %182 = vset.pattern.permute.xlu0 0
  %183 = vperm.xlu0 %182, %v173
  %v184 = vpop.permute.xlu0 %183
  %185 = vset.pattern.permute.xlu0 0
  %186 = vperm.xlu0 %185, %v174
  %v187 = vpop.permute.xlu0 %186
  %188 = vset.pattern.permute.xlu0 0
  %189 = vperm.xlu0 %188, %v175
  %v190 = vpop.permute.xlu0 %189
  %191 = vset.pattern.permute.xlu0 0
  %192 = vperm.xlu0 %191, %v176
  %v193 = vpop.permute.xlu0 %192
  %194 = vset.pattern.permute.xlu0 0
  %195 = vperm.xlu0 %194, %v177
  %v196 = vpop.permute.xlu0 %195
  %197 = vset.pattern.permute.xlu0 0
  %198 = vperm.xlu0 %197, %v178
  %v199 = vpop.permute.xlu0 %198
  %vm200 = vcmp.eq.s32.totalorder %v181, 1
  %vm201 = vcmp.eq.s32.totalorder %v184, 1
  %vm202 = vcmp.eq.s32.totalorder %v187, 1
  %vm203 = vcmp.eq.s32.totalorder %v190, 1
  %vm204 = vcmp.eq.s32.totalorder %v193, 1
  %vm205 = vcmp.eq.s32.totalorder %v196, 1
  %vm206 = vcmp.eq.s32.totalorder %v199, 1
  %v207 = vsel %vm200, %v11, 0.0
  %v208 = vsel %vm201, %v12, 0.0
  %v209 = vsel %vm202, %v13, 0.0
  %v210 = vsel %vm203, %v14, 0.0
  %v211 = vsel %vm204, %v15, 0.0
  %v212 = vsel %vm205, %v16, 0.0
  %v213 = vsel %vm206, %v17, 0.0
  %221 = vrot.lane.b32.xlu0 %v207, 120
  %v222 = vpop.permute.xlu0 %221
  %223 = vrot.lane.b32.xlu0 %v208, 120
  %v224 = vpop.permute.xlu0 %223
  %225 = vrot.lane.b32.xlu0 %v209, 120
  %v226 = vpop.permute.xlu0 %225
  %227 = vrot.lane.b32.xlu0 %v210, 120
  %v228 = vpop.permute.xlu0 %227
  %229 = vrot.lane.b32.xlu0 %v211, 120
  %v230 = vpop.permute.xlu0 %229
  %231 = vrot.lane.b32.xlu0 %v212, 120
  %v232 = vpop.permute.xlu0 %231
  %233 = vrot.lane.b32.xlu0 %v213, 120
  %v234 = vpop.permute.xlu0 %233
  %v242 = vadd.f32 %v158, %v222
  %v243 = vadd.f32 %v159, %v224
  %v244 = vadd.f32 %v160, %v226
  %v245 = vadd.f32 %v161, %v228
  %v246 = vadd.f32 %v162, %v230
  %v247 = vadd.f32 %v163, %v232
  %v248 = vadd.f32 %v164, %v234
  %vm249 = vcmp.gt.f32.partialorder %v18, 3.0
  %vm250 = vcmp.gt.f32.partialorder %v19, 3.0
  %vm251 = vcmp.gt.f32.partialorder %v20, 3.0
  %vm252 = vcmp.gt.f32.partialorder %v21, 3.0
  %vm253 = vcmp.gt.f32.partialorder %v22, 3.0
  %vm254 = vcmp.gt.f32.partialorder %v23, 3.0
  %vm255 = vcmp.gt.f32.partialorder %v24, 3.0
  %v256 = vsel %vm249, 1, 0
  %v257 = vsel %vm250, 1, 0
  %v258 = vsel %vm251, 1, 0
  %v259 = vsel %vm252, 1, 0
  %v260 = vsel %vm253, 1, 0
  %v261 = vsel %vm254, 1, 0
  %v262 = vsel %vm255, 1, 0
  %263 = vset.pattern.permute.xlu0 0
  %264 = vperm.xlu0 %263, %v256
  %v265 = vpop.permute.xlu0 %264
  %266 = vset.pattern.permute.xlu0 0
  %267 = vperm.xlu0 %266, %v257
  %v268 = vpop.permute.xlu0 %267
  %269 = vset.pattern.permute.xlu0 0
  %270 = vperm.xlu0 %269, %v258
  %v271 = vpop.permute.xlu0 %270
  %272 = vset.pattern.permute.xlu0 0
  %273 = vperm.xlu0 %272, %v259
  %v274 = vpop.permute.xlu0 %273
  %275 = vset.pattern.permute.xlu0 0
  %276 = vperm.xlu0 %275, %v260
  %v277 = vpop.permute.xlu0 %276
  %278 = vset.pattern.permute.xlu0 0
  %279 = vperm.xlu0 %278, %v261
  %v280 = vpop.permute.xlu0 %279
  %281 = vset.pattern.permute.xlu0 0
  %282 = vperm.xlu0 %281, %v262
  %v283 = vpop.permute.xlu0 %282
  %vm284 = vcmp.eq.s32.totalorder %v265, 1
  %vm285 = vcmp.eq.s32.totalorder %v268, 1
  %vm286 = vcmp.eq.s32.totalorder %v271, 1
  %vm287 = vcmp.eq.s32.totalorder %v274, 1
  %vm288 = vcmp.eq.s32.totalorder %v277, 1
  %vm289 = vcmp.eq.s32.totalorder %v280, 1
  %vm290 = vcmp.eq.s32.totalorder %v283, 1
  %v291 = vsel %vm284, %v11, 0.0
  %v292 = vsel %vm285, %v12, 0.0
  %v293 = vsel %vm286, %v13, 0.0
  %v294 = vsel %vm287, %v14, 0.0
  %v295 = vsel %vm288, %v15, 0.0
  %v296 = vsel %vm289, %v16, 0.0
  %v297 = vsel %vm290, %v17, 0.0
  %305 = vrot.lane.b32.xlu0 %v291, 116
  %v306 = vpop.permute.xlu0 %305
  %307 = vrot.lane.b32.xlu0 %v292, 116
  %v308 = vpop.permute.xlu0 %307
  %309 = vrot.lane.b32.xlu0 %v293, 116
  %v310 = vpop.permute.xlu0 %309
  %311 = vrot.lane.b32.xlu0 %v294, 116
  %v312 = vpop.permute.xlu0 %311
  %313 = vrot.lane.b32.xlu0 %v295, 116
  %v314 = vpop.permute.xlu0 %313
  %315 = vrot.lane.b32.xlu0 %v296, 116
  %v316 = vpop.permute.xlu0 %315
  %317 = vrot.lane.b32.xlu0 %v297, 116
  %v318 = vpop.permute.xlu0 %317
  %v326 = vadd.f32 %v242, %v306
  %v327 = vadd.f32 %v243, %v308
  %v328 = vadd.f32 %v244, %v310
  %v329 = vadd.f32 %v245, %v312
  %v330 = vadd.f32 %v246, %v314
  %v331 = vadd.f32 %v247, %v316
  %v332 = vadd.f32 %v248, %v318
  %vm333 = vcmp.gt.f32.partialorder %v18, 4.0
  %vm334 = vcmp.gt.f32.partialorder %v19, 4.0
  %vm335 = vcmp.gt.f32.partialorder %v20, 4.0
  %vm336 = vcmp.gt.f32.partialorder %v21, 4.0
  %vm337 = vcmp.gt.f32.partialorder %v22, 4.0
  %vm338 = vcmp.gt.f32.partialorder %v23, 4.0
  %vm339 = vcmp.gt.f32.partialorder %v24, 4.0
  %v340 = vsel %vm333, 1, 0
  %v341 = vsel %vm334, 1, 0
  %v342 = vsel %vm335, 1, 0
  %v343 = vsel %vm336, 1, 0
  %v344 = vsel %vm337, 1, 0
  %v345 = vsel %vm338, 1, 0
  %v346 = vsel %vm339, 1, 0
  %347 = vset.pattern.permute.xlu0 0
  %348 = vperm.xlu0 %347, %v340
  %v349 = vpop.permute.xlu0 %348
  %350 = vset.pattern.permute.xlu0 0
  %351 = vperm.xlu0 %350, %v341
  %v352 = vpop.permute.xlu0 %351
  %353 = vset.pattern.permute.xlu0 0
  %354 = vperm.xlu0 %353, %v342
  %v355 = vpop.permute.xlu0 %354
  %356 = vset.pattern.permute.xlu0 0
  %357 = vperm.xlu0 %356, %v343
  %v358 = vpop.permute.xlu0 %357
  %359 = vset.pattern.permute.xlu0 0
  %360 = vperm.xlu0 %359, %v344
  %v361 = vpop.permute.xlu0 %360
  %362 = vset.pattern.permute.xlu0 0
  %363 = vperm.xlu0 %362, %v345
  %v364 = vpop.permute.xlu0 %363
  %365 = vset.pattern.permute.xlu0 0
  %366 = vperm.xlu0 %365, %v346
  %v367 = vpop.permute.xlu0 %366
  %vm368 = vcmp.eq.s32.totalorder %v349, 1
  %vm369 = vcmp.eq.s32.totalorder %v352, 1
  %vm370 = vcmp.eq.s32.totalorder %v355, 1
  %vm371 = vcmp.eq.s32.totalorder %v358, 1
  %vm372 = vcmp.eq.s32.totalorder %v361, 1
  %vm373 = vcmp.eq.s32.totalorder %v364, 1
  %vm374 = vcmp.eq.s32.totalorder %v367, 1
  %v375 = vsel %vm368, %v11, 0.0
  %v376 = vsel %vm369, %v12, 0.0
  %v377 = vsel %vm370, %v13, 0.0
  %v378 = vsel %vm371, %v14, 0.0
  %v379 = vsel %vm372, %v15, 0.0
  %v380 = vsel %vm373, %v16, 0.0
  %v381 = vsel %vm374, %v17, 0.0
  %389 = vrot.lane.b32.xlu0 %v375, 112
  %v390 = vpop.permute.xlu0 %389
  %391 = vrot.lane.b32.xlu0 %v376, 112
  %v392 = vpop.permute.xlu0 %391
  %393 = vrot.lane.b32.xlu0 %v377, 112
  %v394 = vpop.permute.xlu0 %393
  %395 = vrot.lane.b32.xlu0 %v378, 112
  %v396 = vpop.permute.xlu0 %395
  %397 = vrot.lane.b32.xlu0 %v379, 112
  %v398 = vpop.permute.xlu0 %397
  %399 = vrot.lane.b32.xlu0 %v380, 112
  %v400 = vpop.permute.xlu0 %399
  %401 = vrot.lane.b32.xlu0 %v381, 112
  %v402 = vpop.permute.xlu0 %401
  %v410 = vadd.f32 %v326, %v390
  %v411 = vadd.f32 %v327, %v392
  %v412 = vadd.f32 %v328, %v394
  %v413 = vadd.f32 %v329, %v396
  %v414 = vadd.f32 %v330, %v398
  %v415 = vadd.f32 %v331, %v400
  %v416 = vadd.f32 %v332, %v402
  %vm417 = vcmp.gt.f32.partialorder %v18, 5.0
  %vm418 = vcmp.gt.f32.partialorder %v19, 5.0
  %vm419 = vcmp.gt.f32.partialorder %v20, 5.0
  %vm420 = vcmp.gt.f32.partialorder %v21, 5.0
  %vm421 = vcmp.gt.f32.partialorder %v22, 5.0
  %vm422 = vcmp.gt.f32.partialorder %v23, 5.0
  %vm423 = vcmp.gt.f32.partialorder %v24, 5.0
  %v424 = vsel %vm417, 1, 0
  %v425 = vsel %vm418, 1, 0
  %v426 = vsel %vm419, 1, 0
  %v427 = vsel %vm420, 1, 0
  %v428 = vsel %vm421, 1, 0
  %v429 = vsel %vm422, 1, 0
  %v430 = vsel %vm423, 1, 0
  %431 = vset.pattern.permute.xlu0 0
  %432 = vperm.xlu0 %431, %v424
  %v433 = vpop.permute.xlu0 %432
  %434 = vset.pattern.permute.xlu0 0
  %435 = vperm.xlu0 %434, %v425
  %v436 = vpop.permute.xlu0 %435
  %437 = vset.pattern.permute.xlu0 0
  %438 = vperm.xlu0 %437, %v426
  %v439 = vpop.permute.xlu0 %438
  %440 = vset.pattern.permute.xlu0 0
  %441 = vperm.xlu0 %440, %v427
  %v442 = vpop.permute.xlu0 %441
  %443 = vset.pattern.permute.xlu0 0
  %444 = vperm.xlu0 %443, %v428
  %v445 = vpop.permute.xlu0 %444
  %446 = vset.pattern.permute.xlu0 0
  %447 = vperm.xlu0 %446, %v429
  %v448 = vpop.permute.xlu0 %447
  %449 = vset.pattern.permute.xlu0 0
  %450 = vperm.xlu0 %449, %v430
  %v451 = vpop.permute.xlu0 %450
  %vm452 = vcmp.eq.s32.totalorder %v433, 1
  %vm453 = vcmp.eq.s32.totalorder %v436, 1
  %vm454 = vcmp.eq.s32.totalorder %v439, 1
  %vm455 = vcmp.eq.s32.totalorder %v442, 1
  %vm456 = vcmp.eq.s32.totalorder %v445, 1
  %vm457 = vcmp.eq.s32.totalorder %v448, 1
  %vm458 = vcmp.eq.s32.totalorder %v451, 1
  %v459 = vsel %vm452, %v11, 0.0
  %v460 = vsel %vm453, %v12, 0.0
  %v461 = vsel %vm454, %v13, 0.0
  %v462 = vsel %vm455, %v14, 0.0
  %v463 = vsel %vm456, %v15, 0.0
  %v464 = vsel %vm457, %v16, 0.0
  %v465 = vsel %vm458, %v17, 0.0
  %473 = vrot.lane.b32.xlu0 %v459, 108
  %v474 = vpop.permute.xlu0 %473
  %475 = vrot.lane.b32.xlu0 %v460, 108
  %v476 = vpop.permute.xlu0 %475
  %477 = vrot.lane.b32.xlu0 %v461, 108
  %v478 = vpop.permute.xlu0 %477
  %479 = vrot.lane.b32.xlu0 %v462, 108
  %v480 = vpop.permute.xlu0 %479
  %481 = vrot.lane.b32.xlu0 %v463, 108
  %v482 = vpop.permute.xlu0 %481
  %483 = vrot.lane.b32.xlu0 %v464, 108
  %v484 = vpop.permute.xlu0 %483
  %485 = vrot.lane.b32.xlu0 %v465, 108
  %v486 = vpop.permute.xlu0 %485
  %v494 = vadd.f32 %v410, %v474
  %v495 = vadd.f32 %v411, %v476
  %v496 = vadd.f32 %v412, %v478
  %v497 = vadd.f32 %v413, %v480
  %v498 = vadd.f32 %v414, %v482
  %v499 = vadd.f32 %v415, %v484
  %v500 = vadd.f32 %v416, %v486
  %vm501 = vcmp.gt.f32.partialorder %v18, 6.0
  %vm502 = vcmp.gt.f32.partialorder %v19, 6.0
  %vm503 = vcmp.gt.f32.partialorder %v20, 6.0
  %vm504 = vcmp.gt.f32.partialorder %v21, 6.0
  %vm505 = vcmp.gt.f32.partialorder %v22, 6.0
  %vm506 = vcmp.gt.f32.partialorder %v23, 6.0
  %vm507 = vcmp.gt.f32.partialorder %v24, 6.0
  %v508 = vsel %vm501, 1, 0
  %v509 = vsel %vm502, 1, 0
  %v510 = vsel %vm503, 1, 0
  %v511 = vsel %vm504, 1, 0
  %v512 = vsel %vm505, 1, 0
  %v513 = vsel %vm506, 1, 0
  %v514 = vsel %vm507, 1, 0
  %515 = vset.pattern.permute.xlu0 0
  %516 = vperm.xlu0 %515, %v508
  %v517 = vpop.permute.xlu0 %516
  %518 = vset.pattern.permute.xlu0 0
  %519 = vperm.xlu0 %518, %v509
  %v520 = vpop.permute.xlu0 %519
  %521 = vset.pattern.permute.xlu0 0
  %522 = vperm.xlu0 %521, %v510
  %v523 = vpop.permute.xlu0 %522
  %524 = vset.pattern.permute.xlu0 0
  %525 = vperm.xlu0 %524, %v511
  %v526 = vpop.permute.xlu0 %525
  %527 = vset.pattern.permute.xlu0 0
  %528 = vperm.xlu0 %527, %v512
  %v529 = vpop.permute.xlu0 %528
  %530 = vset.pattern.permute.xlu0 0
  %531 = vperm.xlu0 %530, %v513
  %v532 = vpop.permute.xlu0 %531
  %533 = vset.pattern.permute.xlu0 0
  %534 = vperm.xlu0 %533, %v514
  %v535 = vpop.permute.xlu0 %534
  %vm536 = vcmp.eq.s32.totalorder %v517, 1
  %vm537 = vcmp.eq.s32.totalorder %v520, 1
  %vm538 = vcmp.eq.s32.totalorder %v523, 1
  %vm539 = vcmp.eq.s32.totalorder %v526, 1
  %vm540 = vcmp.eq.s32.totalorder %v529, 1
  %vm541 = vcmp.eq.s32.totalorder %v532, 1
  %vm542 = vcmp.eq.s32.totalorder %v535, 1
  %v543 = vsel %vm536, %v11, 0.0
  %v544 = vsel %vm537, %v12, 0.0
  %v545 = vsel %vm538, %v13, 0.0
  %v546 = vsel %vm539, %v14, 0.0
  %v547 = vsel %vm540, %v15, 0.0
  %v548 = vsel %vm541, %v16, 0.0
  %v549 = vsel %vm542, %v17, 0.0
  %557 = vrot.lane.b32.xlu0 %v543, 104
  %v558 = vpop.permute.xlu0 %557
  %559 = vrot.lane.b32.xlu0 %v544, 104
  %v560 = vpop.permute.xlu0 %559
  %561 = vrot.lane.b32.xlu0 %v545, 104
  %v562 = vpop.permute.xlu0 %561
  %563 = vrot.lane.b32.xlu0 %v546, 104
  %v564 = vpop.permute.xlu0 %563
  %565 = vrot.lane.b32.xlu0 %v547, 104
  %v566 = vpop.permute.xlu0 %565
  %567 = vrot.lane.b32.xlu0 %v548, 104
  %v568 = vpop.permute.xlu0 %567
  %569 = vrot.lane.b32.xlu0 %v549, 104
  %v570 = vpop.permute.xlu0 %569
  %v578 = vadd.f32 %v494, %v558
  %v579 = vadd.f32 %v495, %v560
  %v580 = vadd.f32 %v496, %v562
  %v581 = vadd.f32 %v497, %v564
  %v582 = vadd.f32 %v498, %v566
  %v583 = vadd.f32 %v499, %v568
  %v584 = vadd.f32 %v500, %v570
  %vm585 = vcmp.gt.f32.partialorder %v18, 7.0
  %vm586 = vcmp.gt.f32.partialorder %v19, 7.0
  %vm587 = vcmp.gt.f32.partialorder %v20, 7.0
  %vm588 = vcmp.gt.f32.partialorder %v21, 7.0
  %vm589 = vcmp.gt.f32.partialorder %v22, 7.0
  %vm590 = vcmp.gt.f32.partialorder %v23, 7.0
  %vm591 = vcmp.gt.f32.partialorder %v24, 7.0
  %v592 = vsel %vm585, 1, 0
  %v593 = vsel %vm586, 1, 0
  %v594 = vsel %vm587, 1, 0
  %v595 = vsel %vm588, 1, 0
  %v596 = vsel %vm589, 1, 0
  %v597 = vsel %vm590, 1, 0
  %v598 = vsel %vm591, 1, 0
  %599 = vset.pattern.permute.xlu0 0
  %600 = vperm.xlu0 %599, %v592
  %v601 = vpop.permute.xlu0 %600
  %602 = vset.pattern.permute.xlu0 0
  %603 = vperm.xlu0 %602, %v593
  %v604 = vpop.permute.xlu0 %603
  %605 = vset.pattern.permute.xlu0 0
  %606 = vperm.xlu0 %605, %v594
  %v607 = vpop.permute.xlu0 %606
  %608 = vset.pattern.permute.xlu0 0
  %609 = vperm.xlu0 %608, %v595
  %v610 = vpop.permute.xlu0 %609
  %611 = vset.pattern.permute.xlu0 0
  %612 = vperm.xlu0 %611, %v596
  %v613 = vpop.permute.xlu0 %612
  %614 = vset.pattern.permute.xlu0 0
  %615 = vperm.xlu0 %614, %v597
  %v616 = vpop.permute.xlu0 %615
  %617 = vset.pattern.permute.xlu0 0
  %618 = vperm.xlu0 %617, %v598
  %v619 = vpop.permute.xlu0 %618
  %vm620 = vcmp.eq.s32.totalorder %v601, 1
  %vm621 = vcmp.eq.s32.totalorder %v604, 1
  %vm622 = vcmp.eq.s32.totalorder %v607, 1
  %vm623 = vcmp.eq.s32.totalorder %v610, 1
  %vm624 = vcmp.eq.s32.totalorder %v613, 1
  %vm625 = vcmp.eq.s32.totalorder %v616, 1
  %vm626 = vcmp.eq.s32.totalorder %v619, 1
  %v627 = vsel %vm620, %v11, 0.0
  %v628 = vsel %vm621, %v12, 0.0
  %v629 = vsel %vm622, %v13, 0.0
  %v630 = vsel %vm623, %v14, 0.0
  %v631 = vsel %vm624, %v15, 0.0
  %v632 = vsel %vm625, %v16, 0.0
  %v633 = vsel %vm626, %v17, 0.0
  %641 = vrot.lane.b32.xlu0 %v627, 100
  %v642 = vpop.permute.xlu0 %641
  %643 = vrot.lane.b32.xlu0 %v628, 100
  %v644 = vpop.permute.xlu0 %643
  %645 = vrot.lane.b32.xlu0 %v629, 100
  %v646 = vpop.permute.xlu0 %645
  %647 = vrot.lane.b32.xlu0 %v630, 100
  %v648 = vpop.permute.xlu0 %647
  %649 = vrot.lane.b32.xlu0 %v631, 100
  %v650 = vpop.permute.xlu0 %649
  %651 = vrot.lane.b32.xlu0 %v632, 100
  %v652 = vpop.permute.xlu0 %651
  %653 = vrot.lane.b32.xlu0 %v633, 100
  %v654 = vpop.permute.xlu0 %653
  %v662 = vadd.f32 %v578, %v642
  %v663 = vadd.f32 %v579, %v644
  %v664 = vadd.f32 %v580, %v646
  %v665 = vadd.f32 %v581, %v648
  %v666 = vadd.f32 %v582, %v650
  %v667 = vadd.f32 %v583, %v652
  %v668 = vadd.f32 %v584, %v654
  %v669 = vmax.f32 %v18, 1.0
  %v670 = vmax.f32 %v19, 1.0
  %v671 = vmax.f32 %v20, 1.0
  %v672 = vmax.f32 %v21, 1.0
  %v673 = vmax.f32 %v22, 1.0
  %v674 = vmax.f32 %v23, 1.0
  %v675 = vmax.f32 %v24, 1.0
  %v676 = vrcp.pop %v669
  %v677 = vrcp.pop %v670
  %v678 = vrcp.pop %v671
  %v679 = vrcp.pop %v672
  %v680 = vrcp.pop %v673
  %v681 = vrcp.pop %v674
  %v682 = vrcp.pop %v675
  %684 = vset.pattern.permute.xlu0 0
  %685 = vperm.xlu0 %684, %v676
  %v686 = vpop.permute.xlu0 %685
  %689 = vset.pattern.permute.xlu0 0
  %690 = vperm.xlu0 %689, %v677
  %v691 = vpop.permute.xlu0 %690
  %694 = vset.pattern.permute.xlu0 0
  %695 = vperm.xlu0 %694, %v678
  %v696 = vpop.permute.xlu0 %695
  %699 = vset.pattern.permute.xlu0 0
  %700 = vperm.xlu0 %699, %v679
  %v701 = vpop.permute.xlu0 %700
  %704 = vset.pattern.permute.xlu0 0
  %705 = vperm.xlu0 %704, %v680
  %v706 = vpop.permute.xlu0 %705
  %709 = vset.pattern.permute.xlu0 0
  %710 = vperm.xlu0 %709, %v681
  %v711 = vpop.permute.xlu0 %710
  %714 = vset.pattern.permute.xlu0 0
  %715 = vperm.xlu0 %714, %v682
  %v716 = vpop.permute.xlu0 %715
  %v718 = vmul.f32 %v662, %v686
  %v719 = vmul.f32 %v663, %v691
  %v720 = vmul.f32 %v664, %v696
  %v721 = vmul.f32 %v665, %v701
  %v722 = vmul.f32 %v666, %v706
  %v723 = vmul.f32 %v667, %v711
  %v724 = vmul.f32 %v668, %v716
  %vm725 = vcmask 31744
  %726 = vst.msk [vmem:[%s2] sm:$0xff] %vm725, %v718
  %727 = vst.msk [vmem:[%s2 + $0x8] sm:$0xff] %vm725, %v719
  %728 = vst.msk [vmem:[%s2 + $0x10] sm:$0xff] %vm725, %v720
  %729 = vst.msk [vmem:[%s2 + $0x18] sm:$0xff] %vm725, %v721
  %730 = vst.msk [vmem:[%s2 + $0x20] sm:$0xff] %vm725, %v722
  %731 = vst.msk [vmem:[%s2 + $0x28] sm:$0xff] %vm725, %v723
  %732 = vst.msk [vmem:[%s2 + $0x30] sm:$0xff] %vm725, %v724
  // Predicated region
  $region10: #{tpu_custom_call.1} parent=0 // pred_check
    _
  $region11: #{tpu_custom_call.1} parent=0 // pred_check_branch
    %734 = sbr.rel (0) target = $region13
  $region12: #{tpu_custom_call.1} parent=0 // pred_region
    _
  $region13: #{tpu_custom_call.1} parent=0 // pred_fallthru
    _
  // Predicated region
  $region14: #{tpu_custom_call.1} parent=0 // pred_check
    _
  $region15: #{tpu_custom_call.1} parent=0 // pred_check_branch
    %736 = sbr.rel (0) target = $region17
  $region16: #{tpu_custom_call.1} parent=0 // pred_region
    _
  $region17: #{tpu_custom_call.1} parent=0 // pred_fallthru
    _

</llo_original>
